<compile_context>
chip_gen: v5e
topology: v5e:2x2
jax: 0.10.0
libtpu: 0.0.40
codegen_flags: <defaults>
</compile_context>

<pallas_src>
import jax
import jax.numpy as jnp
from jax import lax
from jax.experimental import pallas as pl
from jax.experimental.pallas import tpu as pltpu


def mlp_kernel(x_ref, w1_ref, b1_ref, w2_ref, b2_ref, w3_ref, b3_ref, o_ref):
    """Fused MLP: Linear(D,16) -> ReLU -> Linear(16,8) -> ReLU -> Linear(8,1).

    Transposed layout (batch on lanes) so every intermediate and the final store are
    lane-dense:
        h1 = relu(W1 @ x^T + b1)   : (16, TB)   (MXU)
        h2 = relu(W2 @ h1 + b2)    : ( 8, TB)   (MXU)
        y  = W3 . h2 + b3          : ( 1, TB)   (VPU broadcast-mul + sublane reduce)
    """
    x = x_ref[...]                                                  # (TB, D)

    # Layer 1 on the MXU. Contract D of W1 (16, D) with D of x (TB, D) -> (16, TB).
    # Same "both last dims contracted" pattern as attention q @ k^T, natively supported.
    h1 = lax.dot_general(
        w1_ref[...], x, (((1,), (1,)), ((), ())),
        preferred_element_type=jnp.float32)                         # (16, TB)
    h1 = jnp.maximum(h1 + b1_ref[...], 0.0)                         # bias stored (16, 1)

    # Layer 2 on the MXU: (8, 16) @ (16, TB) -> (8, TB).
    h2 = jnp.dot(w2_ref[...], h1, preferred_element_type=jnp.float32)
    h2 = jnp.maximum(h2 + b2_ref[...], 0.0)                         # bias stored (8, 1)

    # Layer 3 (M=1, K=8) is too tiny to be worth an MXU pass: broadcast-multiply on the
    # VPU + 8-sublane reduction on the XLU. Keeps the extended slot free and the store
    # lane-dense.
    h3 = jnp.sum(w3_ref[...] * h2, axis=0, keepdims=True)           # (1, TB)
    o_ref[...] = h3 + b3_ref[...]                                   # bias stored (1, 1)


def my_model_forward(x, params, *, block_b=512):
    """x: (B, input_dim) fp32. Returns (B,) fp32 — matches torch forward + squeeze(1)."""
    w1, b1, w2, b2, w3, b3 = params
    B, D = x.shape

    # Batch tile: multiple of 128 (lane-dense output slab, sublane-aligned x tile),
    # large enough to amortize the ~0.35 us per-grid-step overhead, tiny vs VMEM
    # on all of v5e/v6e/v7x (x tile @ TB=512, D=32 fp32 is 64 KiB per buffer).
    tb = min(block_b, max(128, pl.next_power_of_2(B)))
    grid = pl.cdiv(B, tb)
    b_pad = grid * tb
    if b_pad != B:
        x = jnp.pad(x, ((0, b_pad - B), (0, 0)))

    const = lambda i: (0, 0)  # weights/biases: same block every step -> stay resident in VMEM
    out = pl.pallas_call(
        mlp_kernel,
        out_shape=jax.ShapeDtypeStruct((1, b_pad), jnp.float32),
        grid=(grid,),
        in_specs=[
            pl.BlockSpec((tb, D), lambda i: (i, 0)),   # x: the only streamed (pipelined) operand
            pl.BlockSpec(w1.shape, const),
            pl.BlockSpec(b1.shape, const),
            pl.BlockSpec(w2.shape, const),
            pl.BlockSpec(b2.shape, const),
            pl.BlockSpec(w3.shape, const),
            pl.BlockSpec(b3.shape, const),
        ],
        out_specs=pl.BlockSpec((1, tb), lambda i: (0, i)),  # lane-dense (1, TB) output blocks
        compiler_params=pltpu.CompilerParams(
            dimension_semantics=("parallel",)),  # batch axis shards across v7x's 2 TensorCores
    )(x, w1, b1, w2, b2, w3, b3)
    return out[0, :B]


def init_params(key, input_dim):
    """PyTorch-style nn.Linear init (uniform +/- 1/sqrt(fan_in)).

    Weights kept in torch (out, in) layout; biases as (out, 1) columns to match the
    transposed in-kernel layout. W3 is stored as an (8, 1) column for the VPU layer.
    """
    dims = [(input_dim, 16), (16, 8), (8, 1)]
    params = []
    for fan_in, fan_out in dims:
        key, kw, kb = jax.random.split(key, 3)
        bound = 1.0 / (fan_in ** 0.5)
        w = jax.random.uniform(kw, (fan_out, fan_in), jnp.float32, -bound, bound)
        b = jax.random.uniform(kb, (fan_out, 1), jnp.float32, -bound, bound)
        params += [w, b]
    w1, b1, w2, b2, w3, b3 = params
    return (w1, b1, w2, b2, w3.T, b3)  # W3 -> (8, 1)


if __name__ == "__main__":
    key = jax.random.PRNGKey(0)
    k_x, k_p = jax.random.split(key)

    batch, input_dim = 1024, 32   # 2 grid steps at TB=512; still tiny (128 KiB of x)
    x = jax.random.normal(k_x, (batch, input_dim), dtype=jnp.float32)
    params = init_params(k_p, input_dim)

    y = my_model_forward(x, params)
    jax.block_until_ready(y)

    # Pure-JAX reference of the same math (torch: x @ W^T + b per layer, then squeeze(1)).
    w1, b1, w2, b2, w3c, b3 = params
    h1 = jnp.maximum(x @ w1.T + b1[:, 0], 0.0)
    h2 = jnp.maximum(h1 @ w2.T + b2[:, 0], 0.0)
    ref = (h2 @ w3c + b3)[:, 0]

    assert y.shape == (batch,)
    assert jnp.allclose(y, ref, atol=1e-5, rtol=1e-5)

    print("KERNEL_OK")
</pallas_src>

<mosaic_0001>
module attributes {stable_mosaic.version = 11 : i64} {
  func.func @mlp_kernel(%arg0: i32, %arg1: memref<512x32xf32, #tpu.memory_space<vmem>>, %arg2: memref<16x32xf32, #tpu.memory_space<vmem>>, %arg3: memref<16x1xf32, #tpu.memory_space<vmem>>, %arg4: memref<8x16xf32, #tpu.memory_space<vmem>>, %arg5: memref<8x1xf32, #tpu.memory_space<vmem>>, %arg6: memref<8x1xf32, #tpu.memory_space<vmem>>, %arg7: memref<1x1xf32, #tpu.memory_space<vmem>>, %arg8: memref<1x512xf32, #tpu.memory_space<vmem>>) attributes {dimension_semantics = [#tpu.dimension_semantics<parallel>], iteration_bounds = array<i64: 2>, scalar_prefetch = 0 : i64, scratch_operands = 0 : i64, tpu.core_type = #tpu.core_type<tc>, window_params = [{transform_indices = @transform_0, window_bounds = array<i64: 512, 32>}, {pipeline_mode = #tpu.pipeline_mode<synchronous>, transform_indices = @transform_1, window_bounds = array<i64: 16, 32>}, {pipeline_mode = #tpu.pipeline_mode<synchronous>, transform_indices = @transform_2, window_bounds = array<i64: 16, 1>}, {pipeline_mode = #tpu.pipeline_mode<synchronous>, transform_indices = @transform_3, window_bounds = array<i64: 8, 16>}, {pipeline_mode = #tpu.pipeline_mode<synchronous>, transform_indices = @transform_4, window_bounds = array<i64: 8, 1>}, {pipeline_mode = #tpu.pipeline_mode<synchronous>, transform_indices = @transform_5, window_bounds = array<i64: 8, 1>}, {pipeline_mode = #tpu.pipeline_mode<synchronous>, transform_indices = @transform_6, window_bounds = array<i64: 1, 1>}, {transform_indices = @transform_7, window_bounds = array<i64: 1, 512>}]} {
    %c0 = arith.constant 0 : index
    %c0_0 = arith.constant 0 : index
    %0 = vector.load %arg1[%c0, %c0_0] : memref<512x32xf32, #tpu.memory_space<vmem>>, vector<512x32xf32>
    %c0_1 = arith.constant 0 : index
    %c0_2 = arith.constant 0 : index
    %1 = vector.load %arg2[%c0_1, %c0_2] : memref<16x32xf32, #tpu.memory_space<vmem>>, vector<16x32xf32>
    %cst = arith.constant dense<0.000000e+00> : vector<16x512xf32>
    %2 = tpu.matmul %1, %0, %cst {dimension_numbers = #tpu.dot_dimension_numbers<[1], [1], [0], [0], [0, 0, 1, 0], [], []>} : vector<16x32xf32>, vector<512x32xf32>, vector<16x512xf32> -> vector<16x512xf32>
    %c0_3 = arith.constant 0 : index
    %c0_4 = arith.constant 0 : index
    %3 = vector.load %arg3[%c0_3, %c0_4] : memref<16x1xf32, #tpu.memory_space<vmem>>, vector<16x1xf32>
    %4 = vector.broadcast %3 : vector<16x1xf32> to vector<16x512xf32>
    %5 = arith.addf %2, %4 : vector<16x512xf32>
    %cst_5 = arith.constant 0.000000e+00 : f32
    %6 = vector.broadcast %cst_5 : f32 to vector<16x512xf32>
    %7 = arith.maximumf %5, %6 : vector<16x512xf32>
    %c0_6 = arith.constant 0 : index
    %c0_7 = arith.constant 0 : index
    %8 = vector.load %arg4[%c0_6, %c0_7] : memref<8x16xf32, #tpu.memory_space<vmem>>, vector<8x16xf32>
    %cst_8 = arith.constant dense<0.000000e+00> : vector<8x512xf32>
    %9 = tpu.matmul %8, %7, %cst_8 {dimension_numbers = #tpu.dot_dimension_numbers<[1], [0], [0], [1], [0, 0, 1, 1], [], []>} : vector<8x16xf32>, vector<16x512xf32>, vector<8x512xf32> -> vector<8x512xf32>
    %c0_9 = arith.constant 0 : index
    %c0_10 = arith.constant 0 : index
    %10 = vector.load %arg5[%c0_9, %c0_10] : memref<8x1xf32, #tpu.memory_space<vmem>>, vector<8x1xf32>
    %11 = vector.broadcast %10 : vector<8x1xf32> to vector<8x512xf32>
    %12 = arith.addf %9, %11 : vector<8x512xf32>
    %cst_11 = arith.constant 0.000000e+00 : f32
    %13 = vector.broadcast %cst_11 : f32 to vector<8x512xf32>
    %14 = arith.maximumf %12, %13 : vector<8x512xf32>
    %c0_12 = arith.constant 0 : index
    %c0_13 = arith.constant 0 : index
    %15 = vector.load %arg6[%c0_12, %c0_13] : memref<8x1xf32, #tpu.memory_space<vmem>>, vector<8x1xf32>
    %16 = vector.broadcast %15 : vector<8x1xf32> to vector<8x512xf32>
    %17 = arith.mulf %16, %14 : vector<8x512xf32>
    %cst_14 = arith.constant dense<0.000000e+00> : vector<512xf32>
    %18 = vector.multi_reduction <add>, %17, %cst_14 [0] : vector<8x512xf32> to vector<512xf32>
    %19 = vector.shape_cast %18 : vector<512xf32> to vector<1x512xf32>
    %c0_15 = arith.constant 0 : index
    %c0_16 = arith.constant 0 : index
    %20 = vector.load %arg7[%c0_15, %c0_16] : memref<1x1xf32, #tpu.memory_space<vmem>>, vector<1x1xf32>
    %21 = vector.broadcast %20 : vector<1x1xf32> to vector<1x512xf32>
    %22 = arith.addf %19, %21 : vector<1x512xf32>
    %c0_17 = arith.constant 0 : index
    %c0_18 = arith.constant 0 : index
    %23 = vector.load %arg8[%c0_17, %c0_18] : memref<1x512xf32, #tpu.memory_space<vmem>>, vector<1x512xf32>
    tpu.vector_store %arg8[%c0_17, %c0_18], %22 {strides = array<i32>} : memref<1x512xf32, #tpu.memory_space<vmem>>, vector<1x512xf32>,
    return
  }
  func.func @transform_0(%arg0: i32) -> (i32, i32) {
    %c0_i32 = arith.constant 0 : i32
    %c0_i32_0 = arith.constant 0 : i32
    return %arg0, %c0_i32 : i32, i32
  }
  func.func @transform_1(%arg0: i32) -> (i32, i32) {
    %c0_i32 = arith.constant 0 : i32
    %c0_i32_0 = arith.constant 0 : i32
    %c0_i32_1 = arith.constant 0 : i32
    return %c0_i32, %c0_i32_0 : i32, i32
  }
  func.func @transform_2(%arg0: i32) -> (i32, i32) {
    %c0_i32 = arith.constant 0 : i32
    %c0_i32_0 = arith.constant 0 : i32
    %c0_i32_1 = arith.constant 0 : i32
    return %c0_i32, %c0_i32_0 : i32, i32
  }
  func.func @transform_3(%arg0: i32) -> (i32, i32) {
    %c0_i32 = arith.constant 0 : i32
    %c0_i32_0 = arith.constant 0 : i32
    %c0_i32_1 = arith.constant 0 : i32
    return %c0_i32, %c0_i32_0 : i32, i32
  }
  func.func @transform_4(%arg0: i32) -> (i32, i32) {
    %c0_i32 = arith.constant 0 : i32
    %c0_i32_0 = arith.constant 0 : i32
    %c0_i32_1 = arith.constant 0 : i32
    return %c0_i32, %c0_i32_0 : i32, i32
  }
  func.func @transform_5(%arg0: i32) -> (i32, i32) {
    %c0_i32 = arith.constant 0 : i32
    %c0_i32_0 = arith.constant 0 : i32
    %c0_i32_1 = arith.constant 0 : i32
    return %c0_i32, %c0_i32_0 : i32, i32
  }
  func.func @transform_6(%arg0: i32) -> (i32, i32) {
    %c0_i32 = arith.constant 0 : i32
    %c0_i32_0 = arith.constant 0 : i32
    %c0_i32_1 = arith.constant 0 : i32
    return %c0_i32, %c0_i32_0 : i32, i32
  }
  func.func @transform_7(%arg0: i32) -> (i32, i32) {
    %c0_i32 = arith.constant 0 : i32
    %c0_i32_0 = arith.constant 0 : i32
    return %c0_i32, %arg0 : i32, i32
  }
}

</mosaic_0001>

<llo_original>
// kernel: tpu_custom_call.1
$region0: #{tpu_custom_call.1}
  #allocation0 [shape = 'u32[]', space=smem, size = 0x4, offset = 0x4, fixed_abs, tag = 'smem constant byte address 0x4 - core index']
  #allocation1 [shape = 'u32[72,128]{1,0:T(1,128)}', space=vmem, size = 0x9000, scoped, tag = 'internal scratch']
  #allocation2 [shape = 'f32[1,1]{1,0:T(1,128)S(1)}', space=vmem, size = 0x200, scoped, tag = 'scoped memory for tpu_custom_call.1']
  %s0 = inlined_call_operand.vmem [shape: f32[1024,32], index: 0, kind: input, shape index: {}]
  %s1 = inlined_call_operand.vmem [shape: f32[16,32], index: 1, kind: input, shape index: {}]
  %s2 = inlined_call_operand.vmem [shape: f32[16,1], index: 2, kind: input, shape index: {}]
  %s3 = inlined_call_operand.vmem [shape: f32[8,16], index: 3, kind: input, shape index: {}]
  %s4 = inlined_call_operand.vmem [shape: f32[8,1], index: 4, kind: input, shape index: {}]
  %s5 = inlined_call_operand.vmem [shape: f32[8,1], index: 5, kind: input, shape index: {}]
  %s6 = inlined_call_operand.<no memory space> [shape: f32[1,1], index: 6, kind: input, shape index: {}]
  %s7 = inlined_call_operand.hbm [shape: f32[1,1024], index: 7, kind: output, shape index: {}]
  %s8 = sld [smem:[#allocation0]]
  $region61: #{tpu_custom_call.1} parent=0
    _
  %s10 = ssub.s32 1, %s8
  %s11 = scalar_select 0, %s10, %s8
  %v12 = vstv %s6
  %13 = vst [vmem:[#allocation2] sm:$0x1] %v12
  $region1: #{tpu_custom_call.1} parent=0
    #allocation3 [shape = 'u8[4096]{0}', space=vmem, size = 0x1000, scoped, tag = 'output window, operand 0']
    #allocation4 [shape = 's32[2]{0}', space=sflag, size = 0x8, scoped, tag = 'scoped memory for tpu_custom_call.1']
    %14 = vsyncpa [#allocation4], 0
    %s15 = scalar_lea.sflag [#allocation4], 1
    %16 = vsyncpa %s15, 0
    loop: start=0, step=1, limit=4
    $region2: #{tpu_custom_call.1} parent=1 // loop_pre_header
      _
    $region3: #{tpu_custom_call.1} parent=1 // loop_header
      %s18 = sphi 0, %s22
      %p19 = scmp.ge.s32.totalorder %s18, 4
      %s28 = sphi 0, %s30
      %s31 = sphi 0, %s28
      %s32 = sphi 0, %s31
      %s48 = sphi 0, %s32
      %s52 = sphi 0, %s52
      %s54 = sphi 0, %s52
      %s55 = sphi 0, %s54
      %s69 = sphi 0, %s55
      %s73 = sphi 0, %s73
      %s75 = sphi 0, %s73
      %s76 = sphi 0, %s75
      %s90 = sphi 0, %s76
      %s94 = sphi 0, %s94
      %s96 = sphi 0, %s94
      %s97 = sphi 0, %s96
      %s111 = sphi 0, %s97
      %s115 = sphi 0, %s115
      %s117 = sphi 0, %s115
      %s118 = sphi 0, %s117
      %s132 = sphi 0, %s118
      %s136 = sphi 0, %s136
      %s138 = sphi 0, %s136
      %s139 = sphi 0, %s138
      %s153 = sphi 0, %s139
      %s157 = sphi 0, %s157
      %s159 = sphi 0, %s157
      %s160 = sphi 0, %s159
      %s174 = sphi 0, %s160
      %s180 = sphi 0, %s182
      %s183 = sphi 0, %s180
      %s184 = sphi 0, %s183
      %s200 = sphi 0, %s184
    $region4: #{tpu_custom_call.1} parent=1 // loop_header_branch
      %21 = sbr.rel (%p19) target = $region8
    $region5: #{tpu_custom_call.1} parent=1 // loop_body
      %s23 = ssub.s32 %s18, 1
      %s24 = ssub.s32 %s18, 2
      %s25 = sadd.s32 %s18, 1
      %s26 = ssub.s32 %s18, %s25
      %p27 = scmp.eq.s32.totalorder %s26, 0
      %s29 = sadd.s32 %s28, 1
      %s30 = scalar_select %p27, %s28, %s29
      %p33 = pneg %p27
      %p34 = scmp.eq.s32.totalorder %s18, 1
      %p35 = por %p33, %p34
      %p36 = scmp.ne.s32.totalorder %s28, %s31
      %p37 = scmp.eq.s32.totalorder %s18, 0
      %p38 = por %p36, %p37
      %p39 = scmp.ne.s32.totalorder %s28, %s31
      %p40 = scmp.eq.s32.totalorder %s23, 1
      %p41 = por %p39, %p40
      %p42 = scmp.ne.s32.totalorder %s31, %s32
      %p43 = scmp.eq.s32.totalorder %s23, 0
      %p44 = por %p42, %p43
      %p45 = scmp.ne.s32.totalorder %s31, %s32
      %p46 = scmp.eq.s32.totalorder %s24, 1
      %p47 = por %p45, %p46
      %p49 = scmp.ne.s32.totalorder %s32, %s48
      %p50 = scmp.eq.s32.totalorder %s24, 0
      %p51 = por %p49, %p50
      %s53 = sadd.s32 %s52, 1
      %p56 = scmp.eq.s32.totalorder %s18, 1
      %p57 = scmp.ne.s32.totalorder %s52, %s54
      %p58 = scmp.eq.s32.totalorder %s18, 0
      %p59 = por %p57, %p58
      %p60 = scmp.ne.s32.totalorder %s52, %s54
      %p61 = scmp.eq.s32.totalorder %s23, 1
      %p62 = por %p60, %p61
      %p63 = scmp.ne.s32.totalorder %s54, %s55
      %p64 = scmp.eq.s32.totalorder %s23, 0
      %p65 = por %p63, %p64
      %p66 = scmp.ne.s32.totalorder %s54, %s55
      %p67 = scmp.eq.s32.totalorder %s24, 1
      %p68 = por %p66, %p67
      %p70 = scmp.ne.s32.totalorder %s55, %s69
      %p71 = scmp.eq.s32.totalorder %s24, 0
      %p72 = por %p70, %p71
      %s74 = sadd.s32 %s73, 1
      %p77 = scmp.eq.s32.totalorder %s18, 1
      %p78 = scmp.ne.s32.totalorder %s73, %s75
      %p79 = scmp.eq.s32.totalorder %s18, 0
      %p80 = por %p78, %p79
      %p81 = scmp.ne.s32.totalorder %s73, %s75
      %p82 = scmp.eq.s32.totalorder %s23, 1
      %p83 = por %p81, %p82
      %p84 = scmp.ne.s32.totalorder %s75, %s76
      %p85 = scmp.eq.s32.totalorder %s23, 0
      %p86 = por %p84, %p85
      %p87 = scmp.ne.s32.totalorder %s75, %s76
      %p88 = scmp.eq.s32.totalorder %s24, 1
      %p89 = por %p87, %p88
      %p91 = scmp.ne.s32.totalorder %s76, %s90
      %p92 = scmp.eq.s32.totalorder %s24, 0
      %p93 = por %p91, %p92
      %s95 = sadd.s32 %s94, 1
      %p98 = scmp.eq.s32.totalorder %s18, 1
      %p99 = scmp.ne.s32.totalorder %s94, %s96
      %p100 = scmp.eq.s32.totalorder %s18, 0
      %p101 = por %p99, %p100
      %p102 = scmp.ne.s32.totalorder %s94, %s96
      %p103 = scmp.eq.s32.totalorder %s23, 1
      %p104 = por %p102, %p103
      %p105 = scmp.ne.s32.totalorder %s96, %s97
      %p106 = scmp.eq.s32.totalorder %s23, 0
      %p107 = por %p105, %p106
      %p108 = scmp.ne.s32.totalorder %s96, %s97
      %p109 = scmp.eq.s32.totalorder %s24, 1
      %p110 = por %p108, %p109
      %p112 = scmp.ne.s32.totalorder %s97, %s111
      %p113 = scmp.eq.s32.totalorder %s24, 0
      %p114 = por %p112, %p113
      %s116 = sadd.s32 %s115, 1
      %p119 = scmp.eq.s32.totalorder %s18, 1
      %p120 = scmp.ne.s32.totalorder %s115, %s117
      %p121 = scmp.eq.s32.totalorder %s18, 0
      %p122 = por %p120, %p121
      %p123 = scmp.ne.s32.totalorder %s115, %s117
      %p124 = scmp.eq.s32.totalorder %s23, 1
      %p125 = por %p123, %p124
      %p126 = scmp.ne.s32.totalorder %s117, %s118
      %p127 = scmp.eq.s32.totalorder %s23, 0
      %p128 = por %p126, %p127
      %p129 = scmp.ne.s32.totalorder %s117, %s118
      %p130 = scmp.eq.s32.totalorder %s24, 1
      %p131 = por %p129, %p130
      %p133 = scmp.ne.s32.totalorder %s118, %s132
      %p134 = scmp.eq.s32.totalorder %s24, 0
      %p135 = por %p133, %p134
      %s137 = sadd.s32 %s136, 1
      %p140 = scmp.eq.s32.totalorder %s18, 1
      %p141 = scmp.ne.s32.totalorder %s136, %s138
      %p142 = scmp.eq.s32.totalorder %s18, 0
      %p143 = por %p141, %p142
      %p144 = scmp.ne.s32.totalorder %s136, %s138
      %p145 = scmp.eq.s32.totalorder %s23, 1
      %p146 = por %p144, %p145
      %p147 = scmp.ne.s32.totalorder %s138, %s139
      %p148 = scmp.eq.s32.totalorder %s23, 0
      %p149 = por %p147, %p148
      %p150 = scmp.ne.s32.totalorder %s138, %s139
      %p151 = scmp.eq.s32.totalorder %s24, 1
      %p152 = por %p150, %p151
      %p154 = scmp.ne.s32.totalorder %s139, %s153
      %p155 = scmp.eq.s32.totalorder %s24, 0
      %p156 = por %p154, %p155
      %s158 = sadd.s32 %s157, 1
      %p161 = scmp.eq.s32.totalorder %s18, 1
      %p162 = scmp.ne.s32.totalorder %s157, %s159
      %p163 = scmp.eq.s32.totalorder %s18, 0
      %p164 = por %p162, %p163
      %p165 = scmp.ne.s32.totalorder %s157, %s159
      %p166 = scmp.eq.s32.totalorder %s23, 1
      %p167 = por %p165, %p166
      %p168 = scmp.ne.s32.totalorder %s159, %s160
      %p169 = scmp.eq.s32.totalorder %s23, 0
      %p170 = por %p168, %p169
      %p171 = scmp.ne.s32.totalorder %s159, %s160
      %p172 = scmp.eq.s32.totalorder %s24, 1
      %p173 = por %p171, %p172
      %p175 = scmp.ne.s32.totalorder %s160, %s174
      %p176 = scmp.eq.s32.totalorder %s24, 0
      %p177 = por %p175, %p176
      %s178 = ssub.s32 %s18, %s25
      %p179 = scmp.eq.s32.totalorder %s178, 0
      %s181 = sadd.s32 %s180, 1
      %s182 = scalar_select %p179, %s180, %s181
      %p185 = pneg %p179
      %p186 = scmp.eq.s32.totalorder %s18, 1
      %p187 = por %p185, %p186
      %p188 = scmp.ne.s32.totalorder %s180, %s183
      %p189 = scmp.eq.s32.totalorder %s18, 0
      %p190 = por %p188, %p189
      %p191 = scmp.ne.s32.totalorder %s180, %s183
      %p192 = scmp.eq.s32.totalorder %s23, 1
      %p193 = por %p191, %p192
      %p194 = scmp.ne.s32.totalorder %s183, %s184
      %p195 = scmp.eq.s32.totalorder %s23, 0
      %p196 = por %p194, %p195
      %p197 = scmp.ne.s32.totalorder %s183, %s184
      %p198 = scmp.eq.s32.totalorder %s24, 1
      %p199 = por %p197, %p198
      %p201 = scmp.ne.s32.totalorder %s184, %s200
      %p202 = scmp.eq.s32.totalorder %s24, 0
      %p203 = por %p201, %p202
      %p204 = scmp.le.s32.totalorder 1, %s18
      %p205 = scmp.lt.s32.totalorder %s18, 3
      %p206 = pnand %p204, %p205
      %p207 = pneg %p206
      // Predicated region
      $region9: #{tpu_custom_call.1} parent=5 // pred_check
        _
      $region10: #{tpu_custom_call.1} parent=5 // pred_check_branch
        %209 = sbr.rel (%p206) target = $region12
      $region11: #{tpu_custom_call.1} parent=5 // pred_region
        %s210 = ssub.s32 %s18, 1
        // Predicated region
        $region13: #{tpu_custom_call.1} parent=11 // pred_check
          %p211 = pneg %p65
        $region14: #{tpu_custom_call.1} parent=11 // pred_check_branch
          %213 = sbr.rel (%p211) target = $region16
        $region15: #{tpu_custom_call.1} parent=11 // pred_region
          _
        $region16: #{tpu_custom_call.1} parent=11 // pred_fallthru
          _
        // Predicated region
        $region17: #{tpu_custom_call.1} parent=11 // pred_check
          %p214 = pneg %p86
        $region18: #{tpu_custom_call.1} parent=11 // pred_check_branch
          %216 = sbr.rel (%p214) target = $region20
        $region19: #{tpu_custom_call.1} parent=11 // pred_region
          _
        $region20: #{tpu_custom_call.1} parent=11 // pred_fallthru
          _
        // Predicated region
        $region21: #{tpu_custom_call.1} parent=11 // pred_check
          %p217 = pneg %p107
        $region22: #{tpu_custom_call.1} parent=11 // pred_check_branch
          %219 = sbr.rel (%p217) target = $region24
        $region23: #{tpu_custom_call.1} parent=11 // pred_region
          _
        $region24: #{tpu_custom_call.1} parent=11 // pred_fallthru
          _
        // Predicated region
        $region25: #{tpu_custom_call.1} parent=11 // pred_check
          %p220 = pneg %p128
        $region26: #{tpu_custom_call.1} parent=11 // pred_check_branch
          %222 = sbr.rel (%p220) target = $region28
        $region27: #{tpu_custom_call.1} parent=11 // pred_region
          _
        $region28: #{tpu_custom_call.1} parent=11 // pred_fallthru
          _
        // Predicated region
        $region29: #{tpu_custom_call.1} parent=11 // pred_check
          %p223 = pneg %p149
        $region30: #{tpu_custom_call.1} parent=11 // pred_check_branch
          %225 = sbr.rel (%p223) target = $region32
        $region31: #{tpu_custom_call.1} parent=11 // pred_region
          _
        $region32: #{tpu_custom_call.1} parent=11 // pred_fallthru
          _
        // Predicated region
        $region33: #{tpu_custom_call.1} parent=11 // pred_check
          %p226 = pneg %p170
        $region34: #{tpu_custom_call.1} parent=11 // pred_check_branch
          %228 = sbr.rel (%p226) target = $region36
        $region35: #{tpu_custom_call.1} parent=11 // pred_region
          _
        $region36: #{tpu_custom_call.1} parent=11 // pred_fallthru
          _
      $region12: #{tpu_custom_call.1} parent=5 // pred_fallthru
        _
      %p229 = scmp.lt.s32.totalorder %s18, 2
      // Predicated region
      $region37: #{tpu_custom_call.1} parent=5 // pred_check
        %p230 = pneg %p229
      $region38: #{tpu_custom_call.1} parent=5 // pred_check_branch
        %232 = sbr.rel (%p230) target = $region40
      $region39: #{tpu_custom_call.1} parent=5 // pred_region
        // Predicated region
        $region41: #{tpu_custom_call.1} parent=39 // pred_check
          %p233 = pneg %p38
        $region42: #{tpu_custom_call.1} parent=39 // pred_check_branch
          %235 = sbr.rel (%p233) target = $region44
        $region43: #{tpu_custom_call.1} parent=39 // pred_region
          %s236 = smul.u32 64, %s18
          %p237 = scmp.lt.s32.totalorder %s236, 127
          %s238 = scalar_select %p237, %s236, 127
          %s239 = smul.addr %s238, 8
          %s240 = scalar_lea.vmem %s0, %s239
          %s241 = smul.u32 64, %s18
        $region44: #{tpu_custom_call.1} parent=39 // pred_fallthru
          _
      $region40: #{tpu_custom_call.1} parent=5 // pred_fallthru
        _
      %p242 = scmp.le.s32.totalorder 1, %s18
      %p243 = scmp.lt.s32.totalorder %s18, 3
      %p244 = pnand %p242, %p243
      %p245 = pneg %p244
      // Predicated region
      $region45: #{tpu_custom_call.1} parent=5 // pred_check
        _
      $region46: #{tpu_custom_call.1} parent=5 // pred_check_branch
        %247 = sbr.rel (%p244) target = $region48
      $region47: #{tpu_custom_call.1} parent=5 // pred_region
        %s248 = ssub.s32 %s18, 1
        %s249 = smul.u32 64, %s23
        %p250 = scmp.lt.s32.totalorder %s249, 127
        %s251 = scalar_select %p250, %s249, 127
        %s252 = smul.addr %s251, 8
        %s253 = scalar_lea.vmem %s0, %s252
        %p254 = pneg %p44
        %p255 = pneg %p41
        %p256 = pneg %p65
        %p257 = pneg %p62
        %p258 = pneg %p86
        %p259 = pneg %p83
        %p260 = pneg %p107
        %p261 = pneg %p104
        %p262 = pneg %p128
        %p263 = pneg %p125
        %p264 = pneg %p149
        %p265 = pneg %p146
        %p266 = pneg %p170
        %p267 = pneg %p167
        %p268 = pneg %p196
        %p269 = pneg %p193
        %s270 = sand.u32 %s183, 1
        %s271 = scalar_lea.sflag [#allocation4], %s270
        %s272 = sand.u32 %s183, 1
        %s273 = smul.addr %s272, 4
        %s274 = scalar_lea.vmem [#allocation3], %s273
        %s275 = smul.u32 64, %s23
        %p276 = scmp.lt.s32.totalorder %s275, 127
        %s277 = scalar_select %p276, %s275, 127
        %s278 = smul.addr %s277, 8
        %s279 = scalar_lea.vmem %s0, %s278
        %s280 = smul.u32 64, %s23
        %s281 = smul.u32 4, %s23
        %v282 = vld [vmem:[%s279] sm:$0xff]
        %v283 = vld [vmem:[%s279 + $0x8] sm:$0xff]
        %v284 = vld [vmem:[%s279 + $0x10] sm:$0xff]
        %v285 = vld [vmem:[%s279 + $0x18] sm:$0xff]
        %v286 = vld [vmem:[%s279 + $0x20] sm:$0xff]
        %v287 = vld [vmem:[%s279 + $0x28] sm:$0xff]
        %v288 = vld [vmem:[%s279 + $0x30] sm:$0xff]
        %v289 = vld [vmem:[%s279 + $0x38] sm:$0xff]
        %v290 = vld [vmem:[%s279 + $0x40] sm:$0xff]
        %v291 = vld [vmem:[%s279 + $0x48] sm:$0xff]
        %v292 = vld [vmem:[%s279 + $0x50] sm:$0xff]
        %v293 = vld [vmem:[%s279 + $0x58] sm:$0xff]
        %v294 = vld [vmem:[%s279 + $0x60] sm:$0xff]
        %v295 = vld [vmem:[%s279 + $0x68] sm:$0xff]
        %v296 = vld [vmem:[%s279 + $0x70] sm:$0xff]
        %v297 = vld [vmem:[%s279 + $0x78] sm:$0xff]
        %v298 = vld [vmem:[%s279 + $0x80] sm:$0xff]
        %v299 = vld [vmem:[%s279 + $0x88] sm:$0xff]
        %v300 = vld [vmem:[%s279 + $0x90] sm:$0xff]
        %v301 = vld [vmem:[%s279 + $0x98] sm:$0xff]
        %v302 = vld [vmem:[%s279 + $0xa0] sm:$0xff]
        %v303 = vld [vmem:[%s279 + $0xa8] sm:$0xff]
        %v304 = vld [vmem:[%s279 + $0xb0] sm:$0xff]
        %v305 = vld [vmem:[%s279 + $0xb8] sm:$0xff]
        %v306 = vld [vmem:[%s279 + $0xc0] sm:$0xff]
        %v307 = vld [vmem:[%s279 + $0xc8] sm:$0xff]
        %v308 = vld [vmem:[%s279 + $0xd0] sm:$0xff]
        %v309 = vld [vmem:[%s279 + $0xd8] sm:$0xff]
        %v310 = vld [vmem:[%s279 + $0xe0] sm:$0xff]
        %v311 = vld [vmem:[%s279 + $0xe8] sm:$0xff]
        %v312 = vld [vmem:[%s279 + $0xf0] sm:$0xff]
        %v313 = vld [vmem:[%s279 + $0xf8] sm:$0xff]
        %v314 = vld [vmem:[%s279 + $0x100] sm:$0xff]
        %v315 = vld [vmem:[%s279 + $0x108] sm:$0xff]
        %v316 = vld [vmem:[%s279 + $0x110] sm:$0xff]
        %v317 = vld [vmem:[%s279 + $0x118] sm:$0xff]
        %v318 = vld [vmem:[%s279 + $0x120] sm:$0xff]
        %v319 = vld [vmem:[%s279 + $0x128] sm:$0xff]
        %v320 = vld [vmem:[%s279 + $0x130] sm:$0xff]
        %v321 = vld [vmem:[%s279 + $0x138] sm:$0xff]
        %v322 = vld [vmem:[%s279 + $0x140] sm:$0xff]
        %v323 = vld [vmem:[%s279 + $0x148] sm:$0xff]
        %v324 = vld [vmem:[%s279 + $0x150] sm:$0xff]
        %v325 = vld [vmem:[%s279 + $0x158] sm:$0xff]
        %v326 = vld [vmem:[%s279 + $0x160] sm:$0xff]
        %v327 = vld [vmem:[%s279 + $0x168] sm:$0xff]
        %v328 = vld [vmem:[%s279 + $0x170] sm:$0xff]
        %v329 = vld [vmem:[%s279 + $0x178] sm:$0xff]
        %v330 = vld [vmem:[%s279 + $0x180] sm:$0xff]
        %v331 = vld [vmem:[%s279 + $0x188] sm:$0xff]
        %v332 = vld [vmem:[%s279 + $0x190] sm:$0xff]
        %v333 = vld [vmem:[%s279 + $0x198] sm:$0xff]
        %v334 = vld [vmem:[%s279 + $0x1a0] sm:$0xff]
        %v335 = vld [vmem:[%s279 + $0x1a8] sm:$0xff]
        %v336 = vld [vmem:[%s279 + $0x1b0] sm:$0xff]
        %v337 = vld [vmem:[%s279 + $0x1b8] sm:$0xff]
        %v338 = vld [vmem:[%s279 + $0x1c0] sm:$0xff]
        %v339 = vld [vmem:[%s279 + $0x1c8] sm:$0xff]
        %v340 = vld [vmem:[%s279 + $0x1d0] sm:$0xff]
        %v341 = vld [vmem:[%s279 + $0x1d8] sm:$0xff]
        %v342 = vld [vmem:[%s279 + $0x1e0] sm:$0xff]
        %v343 = vld [vmem:[%s279 + $0x1e8] sm:$0xff]
        %v344 = vld [vmem:[%s279 + $0x1f0] sm:$0xff]
        %v345 = vld [vmem:[%s279 + $0x1f8] sm:$0xff]
        %v346 = vld [vmem:[%s1] sm:$0xff]
        %v347 = vld [vmem:[%s1 + $0x8] sm:$0xff]
        %v348 = vld [vmem:[%s2] sm:$0xff]
        %v349 = vld [vmem:[%s2 + $0x8] sm:$0xff]
        %351 = vset.pattern.permute.xlu0 0
        %352 = vperm.xlu0 %351, %v348
        %v353 = vpop.permute.xlu0 %352
        %356 = vset.pattern.permute.xlu0 0
        %357 = vperm.xlu0 %356, %v349
        %v358 = vpop.permute.xlu0 %357
        %vm360 = vcmask 261120
        %v362 = vsel %vm360, %v346, 0
        %v365 = vsel %vm360, %v347, 0
        %v368 = vsel %vm360, %v282, 0
        %v371 = vsel %vm360, %v283, 0
        %v374 = vsel %vm360, %v284, 0
        %v377 = vsel %vm360, %v285, 0
        %v380 = vsel %vm360, %v286, 0
        %v383 = vsel %vm360, %v287, 0
        %v386 = vsel %vm360, %v288, 0
        %v389 = vsel %vm360, %v289, 0
        %v392 = vsel %vm360, %v290, 0
        %v395 = vsel %vm360, %v291, 0
        %v398 = vsel %vm360, %v292, 0
        %v401 = vsel %vm360, %v293, 0
        %v404 = vsel %vm360, %v294, 0
        %v407 = vsel %vm360, %v295, 0
        %v410 = vsel %vm360, %v296, 0
        %v413 = vsel %vm360, %v297, 0
        %v416 = vsel %vm360, %v298, 0
        %v419 = vsel %vm360, %v299, 0
        %v422 = vsel %vm360, %v300, 0
        %v425 = vsel %vm360, %v301, 0
        %v428 = vsel %vm360, %v302, 0
        %v431 = vsel %vm360, %v303, 0
        %v434 = vsel %vm360, %v304, 0
        %v437 = vsel %vm360, %v305, 0
        %v440 = vsel %vm360, %v306, 0
        %v443 = vsel %vm360, %v307, 0
        %v446 = vsel %vm360, %v308, 0
        %v449 = vsel %vm360, %v309, 0
        %v452 = vsel %vm360, %v310, 0
        %v455 = vsel %vm360, %v311, 0
        %v458 = vsel %vm360, %v312, 0
        %v461 = vsel %vm360, %v313, 0
        %v464 = vsel %vm360, %v314, 0
        %v467 = vsel %vm360, %v315, 0
        %v470 = vsel %vm360, %v316, 0
        %v473 = vsel %vm360, %v317, 0
        %v476 = vsel %vm360, %v318, 0
        %v479 = vsel %vm360, %v319, 0
        %v482 = vsel %vm360, %v320, 0
        %v485 = vsel %vm360, %v321, 0
        %v488 = vsel %vm360, %v322, 0
        %v491 = vsel %vm360, %v323, 0
        %v494 = vsel %vm360, %v324, 0
        %v497 = vsel %vm360, %v325, 0
        %v500 = vsel %vm360, %v326, 0
        %v503 = vsel %vm360, %v327, 0
        %v506 = vsel %vm360, %v328, 0
        %v509 = vsel %vm360, %v329, 0
        %v512 = vsel %vm360, %v330, 0
        %v515 = vsel %vm360, %v331, 0
        %v518 = vsel %vm360, %v332, 0
        %v521 = vsel %vm360, %v333, 0
        %v524 = vsel %vm360, %v334, 0
        %v527 = vsel %vm360, %v335, 0
        %v530 = vsel %vm360, %v336, 0
        %v533 = vsel %vm360, %v337, 0
        %v536 = vsel %vm360, %v338, 0
        %v539 = vsel %vm360, %v339, 0
        %v542 = vsel %vm360, %v340, 0
        %v545 = vsel %vm360, %v341, 0
        %v548 = vsel %vm360, %v342, 0
        %v551 = vsel %vm360, %v343, 0
        %v554 = vsel %vm360, %v344, 0
        %v557 = vsel %vm360, %v345, 0
        %559 = vmatpush.xpose.msra.mxu0 %v413
        %560 = vmatpush.xpose.msra.mxu0 %v410
        %561 = vmatpush.xpose.msra.mxu0 %v407
        %562 = vmatpush.xpose.msra.mxu0 %v404
        %563 = vmatpush.xpose.msra.mxu0 %v401
        %564 = vmatpush.xpose.msra.mxu0 %v398
        %565 = vmatpush.xpose.msra.mxu0 %v395
        %566 = vmatpush.xpose.msra.mxu0 %v392
        %567 = vmatpush.xpose.msra.mxu0 %v389
        %568 = vmatpush.xpose.msra.mxu0 %v386
        %569 = vmatpush.xpose.msra.mxu0 %v383
        %570 = vmatpush.xpose.msra.mxu0 %v380
        %571 = vmatpush.xpose.msra.mxu0 %v377
        %572 = vmatpush.xpose.msra.mxu0 %v374
        %573 = vmatpush.xpose.msra.mxu0 %v371
        %574 = vmatpush.xpose.msra.mxu0 %v368
        %575 = vmatmul.f32.gmra.mxu0 %v362
        %v576 = vpop.f32.mrf.mxu0
        %v577 = vadd.f32 %v353, %v576
        %578 = vmatmul.f32.gmra.mxu0 %v365
        %v579 = vpop.f32.mrf.mxu0
        %v580 = vadd.f32 %v358, %v579
        %581 = vdwg.mxu0
        %582 = vmatpush.xpose.msra.mxu0 %v461
        %583 = vmatpush.xpose.msra.mxu0 %v458
        %584 = vmatpush.xpose.msra.mxu0 %v455
        %585 = vmatpush.xpose.msra.mxu0 %v452
        %586 = vmatpush.xpose.msra.mxu0 %v449
        %587 = vmatpush.xpose.msra.mxu0 %v446
        %588 = vmatpush.xpose.msra.mxu0 %v443
        %589 = vmatpush.xpose.msra.mxu0 %v440
        %590 = vmatpush.xpose.msra.mxu0 %v437
        %591 = vmatpush.xpose.msra.mxu0 %v434
        %592 = vmatpush.xpose.msra.mxu0 %v431
        %593 = vmatpush.xpose.msra.mxu0 %v428
        %594 = vmatpush.xpose.msra.mxu0 %v425
        %595 = vmatpush.xpose.msra.mxu0 %v422
        %596 = vmatpush.xpose.msra.mxu0 %v419
        %597 = vmatpush.xpose.msra.mxu0 %v416
        %598 = vmatmul.f32.gmra.mxu0 %v362
        %v599 = vpop.f32.mrf.mxu0
        %v600 = vadd.f32 %v353, %v599
        %601 = vmatmul.f32.gmra.mxu0 %v365
        %v602 = vpop.f32.mrf.mxu0
        %v603 = vadd.f32 %v358, %v602
        %604 = vdwg.mxu0
        %605 = vmatpush.xpose.msra.mxu0 %v509
        %606 = vmatpush.xpose.msra.mxu0 %v506
        %607 = vmatpush.xpose.msra.mxu0 %v503
        %608 = vmatpush.xpose.msra.mxu0 %v500
        %609 = vmatpush.xpose.msra.mxu0 %v497
        %610 = vmatpush.xpose.msra.mxu0 %v494
        %611 = vmatpush.xpose.msra.mxu0 %v491
        %612 = vmatpush.xpose.msra.mxu0 %v488
        %613 = vmatpush.xpose.msra.mxu0 %v485
        %614 = vmatpush.xpose.msra.mxu0 %v482
        %615 = vmatpush.xpose.msra.mxu0 %v479
        %616 = vmatpush.xpose.msra.mxu0 %v476
        %617 = vmatpush.xpose.msra.mxu0 %v473
        %618 = vmatpush.xpose.msra.mxu0 %v470
        %619 = vmatpush.xpose.msra.mxu0 %v467
        %620 = vmatpush.xpose.msra.mxu0 %v464
        %621 = vmatmul.f32.gmra.mxu0 %v362
        %v622 = vpop.f32.mrf.mxu0
        %v623 = vadd.f32 %v353, %v622
        %624 = vmatmul.f32.gmra.mxu0 %v365
        %v625 = vpop.f32.mrf.mxu0
        %v626 = vadd.f32 %v358, %v625
        %627 = vdwg.mxu0
        %628 = vmatpush.xpose.msra.mxu0 %v557
        %629 = vmatpush.xpose.msra.mxu0 %v554
        %630 = vmatpush.xpose.msra.mxu0 %v551
        %631 = vmatpush.xpose.msra.mxu0 %v548
        %632 = vmatpush.xpose.msra.mxu0 %v545
        %633 = vmatpush.xpose.msra.mxu0 %v542
        %634 = vmatpush.xpose.msra.mxu0 %v539
        %635 = vmatpush.xpose.msra.mxu0 %v536
        %636 = vmatpush.xpose.msra.mxu0 %v533
        %637 = vmatpush.xpose.msra.mxu0 %v530
        %638 = vmatpush.xpose.msra.mxu0 %v527
        %639 = vmatpush.xpose.msra.mxu0 %v524
        %640 = vmatpush.xpose.msra.mxu0 %v521
        %641 = vmatpush.xpose.msra.mxu0 %v518
        %642 = vmatpush.xpose.msra.mxu0 %v515
        %643 = vmatpush.xpose.msra.mxu0 %v512
        %644 = vmatmul.f32.gmra.mxu0 %v362
        %v645 = vpop.f32.mrf.mxu0
        %v646 = vadd.f32 %v353, %v645
        %647 = vmatmul.f32.gmra.mxu0 %v365
        %v648 = vpop.f32.mrf.mxu0
        %v649 = vadd.f32 %v358, %v648
        %650 = vdwg.mxu0
        %v651 = vmax.f32 %v577, 0.0
        %v652 = vmax.f32 %v600, 0.0
        %v653 = vmax.f32 %v623, 0.0
        %v654 = vmax.f32 %v646, 0.0
        %v655 = vmax.f32 %v580, 0.0
        %v656 = vmax.f32 %v603, 0.0
        %v657 = vmax.f32 %v626, 0.0
        %v658 = vmax.f32 %v649, 0.0
        %v659 = vld [vmem:[%s3] sm:$0xff]
        %v660 = vld [vmem:[%s4] sm:$0xff]
        %662 = vset.pattern.permute.xlu0 0
        %663 = vperm.xlu0 %662, %v660
        %v664 = vpop.permute.xlu0 %663
        %vm666 = vcmask 130048
        %v668 = vsel %vm666, %v659, 0
        %670 = vmatpush.msra.mxu0 0.0
        %671 = vmatpush.msra.mxu0 0.0
        %672 = vmatpush.msra.mxu0 0.0
        %673 = vmatpush.msra.mxu0 0.0
        %674 = vmatpush.msra.mxu0 0.0
        %675 = vmatpush.msra.mxu0 0.0
        %676 = vmatpush.msra.mxu0 0.0
        %677 = vmatpush.msra.mxu0 0.0
        %678 = vmatpush.msra.mxu0 0.0
        %679 = vmatpush.msra.mxu0 0.0
        %680 = vmatpush.msra.mxu0 0.0
        %681 = vmatpush.msra.mxu0 0.0
        %682 = vmatpush.msra.mxu0 0.0
        %683 = vmatpush.msra.mxu0 0.0
        %684 = vmatpush.msra.mxu0 %v655
        %685 = vmatpush.msra.mxu0 %v651
        %686 = vmatmul.f32.gmra.mxu0 %v668
        %v687 = vpop.f32.mrf.mxu0
        %v688 = vadd.f32 %v664, %v687
        %689 = vdwg.mxu0
        %690 = vmatpush.msra.mxu0 0.0
        %691 = vmatpush.msra.mxu0 0.0
        %692 = vmatpush.msra.mxu0 0.0
        %693 = vmatpush.msra.mxu0 0.0
        %694 = vmatpush.msra.mxu0 0.0
        %695 = vmatpush.msra.mxu0 0.0
        %696 = vmatpush.msra.mxu0 0.0
        %697 = vmatpush.msra.mxu0 0.0
        %698 = vmatpush.msra.mxu0 0.0
        %699 = vmatpush.msra.mxu0 0.0
        %700 = vmatpush.msra.mxu0 0.0
        %701 = vmatpush.msra.mxu0 0.0
        %702 = vmatpush.msra.mxu0 0.0
        %703 = vmatpush.msra.mxu0 0.0
        %704 = vmatpush.msra.mxu0 %v656
        %705 = vmatpush.msra.mxu0 %v652
        %706 = vmatmul.f32.gmra.mxu0 %v668
        %v707 = vpop.f32.mrf.mxu0
        %v708 = vadd.f32 %v664, %v707
        %709 = vdwg.mxu0
        %710 = vmatpush.msra.mxu0 0.0
        %711 = vmatpush.msra.mxu0 0.0
        %712 = vmatpush.msra.mxu0 0.0
        %713 = vmatpush.msra.mxu0 0.0
        %714 = vmatpush.msra.mxu0 0.0
        %715 = vmatpush.msra.mxu0 0.0
        %716 = vmatpush.msra.mxu0 0.0
        %717 = vmatpush.msra.mxu0 0.0
        %718 = vmatpush.msra.mxu0 0.0
        %719 = vmatpush.msra.mxu0 0.0
        %720 = vmatpush.msra.mxu0 0.0
        %721 = vmatpush.msra.mxu0 0.0
        %722 = vmatpush.msra.mxu0 0.0
        %723 = vmatpush.msra.mxu0 0.0
        %724 = vmatpush.msra.mxu0 %v657
        %725 = vmatpush.msra.mxu0 %v653
        %726 = vmatmul.f32.gmra.mxu0 %v668
        %v727 = vpop.f32.mrf.mxu0
        %v728 = vadd.f32 %v664, %v727
        %729 = vdwg.mxu0
        %730 = vmatpush.msra.mxu0 0.0
        %731 = vmatpush.msra.mxu0 0.0
        %732 = vmatpush.msra.mxu0 0.0
        %733 = vmatpush.msra.mxu0 0.0
        %734 = vmatpush.msra.mxu0 0.0
        %735 = vmatpush.msra.mxu0 0.0
        %736 = vmatpush.msra.mxu0 0.0
        %737 = vmatpush.msra.mxu0 0.0
        %738 = vmatpush.msra.mxu0 0.0
        %739 = vmatpush.msra.mxu0 0.0
        %740 = vmatpush.msra.mxu0 0.0
        %741 = vmatpush.msra.mxu0 0.0
        %742 = vmatpush.msra.mxu0 0.0
        %743 = vmatpush.msra.mxu0 0.0
        %744 = vmatpush.msra.mxu0 %v658
        %745 = vmatpush.msra.mxu0 %v654
        %746 = vmatmul.f32.gmra.mxu0 %v668
        %v747 = vpop.f32.mrf.mxu0
        %v748 = vadd.f32 %v664, %v747
        %749 = vdwg.mxu0
        %v750 = vmax.f32 %v688, 0.0
        %v751 = vmax.f32 %v708, 0.0
        %v752 = vmax.f32 %v728, 0.0
        %v753 = vmax.f32 %v748, 0.0
        %v754 = vld [vmem:[%s5] sm:$0xff]
        %756 = vset.pattern.permute.xlu0 0
        %757 = vperm.xlu0 %756, %v754
        %v758 = vpop.permute.xlu0 %757
        %v760 = vmul.f32 %v758, %v750
        %v761 = vmul.f32 %v758, %v751
        %v762 = vmul.f32 %v758, %v752
        %v763 = vmul.f32 %v758, %v753
        %v764 = vrot.slane %v760, 4
        %v765 = vadd.f32 %v760, %v764
        %v766 = vrot.slane %v765, 2
        %v767 = vadd.f32 %v765, %v766
        %v768 = vrot.slane %v767, 1
        %v769 = vadd.f32 %v767, %v768
        %v770 = vrot.slane %v761, 4
        %v771 = vadd.f32 %v761, %v770
        %v772 = vrot.slane %v771, 2
        %v773 = vadd.f32 %v771, %v772
        %v774 = vrot.slane %v773, 1
        %v775 = vadd.f32 %v773, %v774
        %v776 = vrot.slane %v762, 4
        %v777 = vadd.f32 %v762, %v776
        %v778 = vrot.slane %v777, 2
        %v779 = vadd.f32 %v777, %v778
        %v780 = vrot.slane %v779, 1
        %v781 = vadd.f32 %v779, %v780
        %v782 = vrot.slane %v763, 4
        %v783 = vadd.f32 %v763, %v782
        %v784 = vrot.slane %v783, 2
        %v785 = vadd.f32 %v783, %v784
        %v786 = vrot.slane %v785, 1
        %v787 = vadd.f32 %v785, %v786
        %v788 = vld [vmem:[#allocation2] sm:$0x1]
        %790 = vset.pattern.permute.xlu0 0
        %791 = vperm.xlu0 %790, %v788
        %v792 = vpop.permute.xlu0 %791
        %v794 = vperm.slane %v792, 0
        %v795 = vadd.f32 %v769, %v794
        %v796 = vadd.f32 %v775, %v794
        %v797 = vadd.f32 %v781, %v794
        %v798 = vadd.f32 %v787, %v794
        %v803 = vrot.slane %v796, 7
        %v804 = vrot.slane %v797, 6
        %v805 = vrot.slane %v798, 5
        %vm806 = vcmask 1040384
        %v807 = vsel %vm806, %v795, %v803
        %vm808 = vcmask 1042434
        %v809 = vsel %vm808, %v804, %v805
        %vm810 = vcmask 1041408
        %v811 = vsel %vm810, %v807, %v809
        %v813 = vlaneseq
        %vm814 = vcmp.ge.s32.totalorder %v813, 0
        %vm815 = vcmp.lt.s32.totalorder %v813, 512
        %vm816 = vmand %vm814, %vm815
        %817 = vst.msk [vmem:[%s274] sm:$0xf] %vm816, %v811
        %s818 = sand.u32 %s183, 1
        %s819 = scalar_lea.sflag [#allocation4], %s818
        %s820 = sand.u32 %s183, 1
        %s821 = smul.addr %s820, 4
        %s822 = scalar_lea.vmem [#allocation3], %s821
        // Predicated region
        $region49: #{tpu_custom_call.1} parent=47 // pred_check
          %p823 = pneg %p193
        $region50: #{tpu_custom_call.1} parent=47 // pred_check_branch
          %825 = sbr.rel (%p823) target = $region52
        $region51: #{tpu_custom_call.1} parent=47 // pred_region
          %s826 = smul.u32 4, %s23
          %828 = vsyncadd %s819, 0
          %s829 = scalar_lea.hbm %s7, %s826
          %s831 = sshll.u32 %s822, 4
          %s832 = int_to_ptr.vmem [resolvable:$true] %s831
          %s833 = sshll.u32 %s829, 4
          %s834 = int_to_ptr.hbm [resolvable:$true] %s833
          %836 = dma.vmem_to_hbm [thread:$0]  %s832, 64, %s834, %s819
        $region52: #{tpu_custom_call.1} parent=47 // pred_fallthru
          _
      $region48: #{tpu_custom_call.1} parent=5 // pred_fallthru
        _
      %p837 = scmp.le.s32.totalorder 2, %s18
      // Predicated region
      $region53: #{tpu_custom_call.1} parent=5 // pred_check
        %p838 = pneg %p837
      $region54: #{tpu_custom_call.1} parent=5 // pred_check_branch
        %840 = sbr.rel (%p838) target = $region56
      $region55: #{tpu_custom_call.1} parent=5 // pred_region
        %s841 = ssub.s32 %s18, 2
        // Predicated region
        $region57: #{tpu_custom_call.1} parent=55 // pred_check
          %p842 = pneg %p199
        $region58: #{tpu_custom_call.1} parent=55 // pred_check_branch
          %844 = sbr.rel (%p842) target = $region60
        $region59: #{tpu_custom_call.1} parent=55 // pred_region
          %s845 = sand.u32 %s184, 1
          %s846 = scalar_lea.sflag [#allocation4], %s845
          %s847 = sand.u32 %s184, 1
          %s848 = smul.addr %s847, 4
          %s849 = scalar_lea.vmem [#allocation3], %s848
          %851 = dma.done %s846, 64
        $region60: #{tpu_custom_call.1} parent=55 // pred_fallthru
          _
      $region56: #{tpu_custom_call.1} parent=5 // pred_fallthru
        _
    $region6: #{tpu_custom_call.1} parent=1 // loop_footer
      %s22 = sadd.s32 1, %s18
    $region7: #{tpu_custom_call.1} parent=1 // loop_footer_branch
      %17 = sbr.rel target = $region3
    $region8: #{tpu_custom_call.1} parent=1 // loop_exit
      _
    %852 = vsyncpa [#allocation4], 1
    %s853 = scalar_lea.sflag [#allocation4], 1
    %854 = vsyncpa %s853, 1

</llo_original>
